<compile_context>
chip_gen: v7x
topology: tpu7x:2x2x1
jax: 0.10.0
libtpu: 0.0.40
codegen_flags: <defaults>
</compile_context>

<pallas_src>
import functools

import jax
import jax.numpy as jnp
from jax.experimental import pallas as pl
from jax.experimental.pallas import tpu as pltpu

H1 = 256        # hidden-1 width
H2 = 64         # hidden-2 width (logical)
H2P = 128       # hidden-2 width padded to one full lane register
DEFAULT_TILE_B = 512


def _round_up(x, m):
    return ((x + m - 1) // m) * m


def _critic_kernel(x_ref, w1_ref, b1_ref, w2_ref, b2_ref, w3_ref, b3_ref, o_ref):
    # x: [TB, S] bf16; w1: [S, 256] bf16; w2: [256, 128] bf16 (zero-padded cols)
    # b1/b2/w3/b3 are f32; all accumulation in f32.
    x = x_ref[...]
    h1 = jnp.dot(x, w1_ref[...], preferred_element_type=jnp.float32)      # [TB, 256]
    h1 = jnp.maximum(h1 + b1_ref[...], 0.0)                               # f32 VPU
    h2 = jnp.dot(h1.astype(jnp.bfloat16), w2_ref[...],
                 preferred_element_type=jnp.float32)                      # [TB, 128]
    h2 = jnp.maximum(h2 + b2_ref[...], 0.0)                               # f32 VPU
    # Lane-sparse 64(128)->1 tail: multiply-reduce on VPU/XLU instead of MXU.
    out = jnp.sum(h2 * w3_ref[...], axis=-1, keepdims=True) + b3_ref[...]  # [TB, 1]
    o_ref[...] = out


@functools.partial(jax.jit, static_argnames=("tile_b",))
def critic_forward(states, params, *, tile_b=DEFAULT_TILE_B):
    """states: [B, state_dim] float32 -> value: [B, 1] float32."""
    w1, b1, w2, b2, w3, b3 = params
    B, S = states.shape

    # --- pack / pad parameters (cheap, tiny, done under jit) -----------------
    w1_bf = w1.astype(jnp.bfloat16)                                        # [S, 256]
    w2p = jnp.zeros((H1, H2P), jnp.bfloat16).at[:, :H2].set(
        w2.astype(jnp.bfloat16))                                           # [256, 128]
    b2p = jnp.zeros((1, H2P), jnp.float32).at[:, :H2].set(b2)              # [1, 128]
    w3p = jnp.zeros((1, H2P), jnp.float32).at[:, :H2].set(w3[:, 0][None])  # [1, 128]
    b1f = b1.astype(jnp.float32)                                           # [1, 256]
    b3f = b3.astype(jnp.float32)                                           # [1, 1]

    # --- batch tiling ---------------------------------------------------------
    tb = min(tile_b, _round_up(B, 8))          # tile rows, always a multiple of 8
    b_pad = _round_up(B, tb)
    x_bf = states.astype(jnp.bfloat16)
    if b_pad != B:
        x_bf = jnp.pad(x_bf, ((0, b_pad - B), (0, 0)))
    grid = (b_pad // tb,)

    resident = lambda shape: pl.BlockSpec(shape, lambda i: (0, 0))

    out = pl.pallas_call(
        _critic_kernel,
        out_shape=jax.ShapeDtypeStruct((b_pad, 1), jnp.float32),
        grid=grid,
        in_specs=[
            pl.BlockSpec((tb, S), lambda i: (i, 0)),   # streamed states
            resident((S, H1)),                         # w1 (bf16, VMEM-resident)
            resident((1, H1)),                         # b1
            resident((H1, H2P)),                       # w2 padded (bf16)
            resident((1, H2P)),                        # b2 padded
            resident((1, H2P)),                        # w3 as padded row vector
            resident((1, 1)),                          # b3
        ],
        out_specs=pl.BlockSpec((tb, 1), lambda i: (i, 0)),
        compiler_params=pltpu.CompilerParams(
            dimension_semantics=("parallel",),         # both TCs on v7x
        ),
    )(x_bf, w1_bf, b1f, w2p, b2p, w3p, b3f)

    return out[:B]


def init_params(key, state_dim):
    """Deterministic init matching PyTorch nn.Linear default (uniform +/- 1/sqrt(fan_in))."""
    dims = [(state_dim, H1), (H1, H2), (H2, 1)]
    params = []
    for i, (fan_in, fan_out) in enumerate(dims):
        kw, kb = jax.random.split(jax.random.fold_in(key, i))
        bound = 1.0 / jnp.sqrt(fan_in)
        w = jax.random.uniform(kw, (fan_in, fan_out), jnp.float32, -bound, bound)
        b = jax.random.uniform(kb, (1, fan_out), jnp.float32, -bound, bound)
        params += [w, b]
    return tuple(params)


def reference_forward(states, params):
    w1, b1, w2, b2, w3, b3 = params
    h1 = jnp.maximum(states @ w1 + b1, 0.0)
    h2 = jnp.maximum(h1 @ w2 + b2, 0.0)
    return h2 @ w3 + b3


if __name__ == "__main__":
    key = jax.random.PRNGKey(0)
    B, state_dim = 8, 32

    k_x, k_p = jax.random.split(key)
    states = jax.random.normal(k_x, (B, state_dim), jnp.float32)
    params = init_params(k_p, state_dim)

    out = critic_forward(states, params)
    out = jax.block_until_ready(out)

    ref = reference_forward(states, params)
    assert out.shape == (B, 1)
    # bf16 matmul inputs with f32 accumulation -> loose-ish tolerance vs f32 ref.
    assert jnp.allclose(out, ref, atol=3e-2, rtol=3e-2), (out, ref)

    print("KERNEL_OK")
</pallas_src>

<mosaic_0001>
module attributes {stable_mosaic.version = 11 : i64} {
  func.func @_critic_kernel(%arg0: i32, %arg1: memref<8x32xbf16, #tpu.memory_space<vmem>>, %arg2: memref<32x256xbf16, #tpu.memory_space<vmem>>, %arg3: memref<1x256xf32, #tpu.memory_space<vmem>>, %arg4: memref<256x128xbf16, #tpu.memory_space<vmem>>, %arg5: memref<1x128xf32, #tpu.memory_space<vmem>>, %arg6: memref<1x128xf32, #tpu.memory_space<vmem>>, %arg7: memref<1x1xf32, #tpu.memory_space<vmem>>, %arg8: memref<8x1xf32, #tpu.memory_space<vmem>>) attributes {dimension_semantics = [#tpu.dimension_semantics<parallel>], iteration_bounds = array<i64: 1>, scalar_prefetch = 0 : i64, scratch_operands = 0 : i64, tpu.core_type = #tpu.core_type<tc>, window_params = [{transform_indices = @transform_0, window_bounds = array<i64: 8, 32>}, {pipeline_mode = #tpu.pipeline_mode<synchronous>, transform_indices = @transform_1, window_bounds = array<i64: 32, 256>}, {pipeline_mode = #tpu.pipeline_mode<synchronous>, transform_indices = @transform_2, window_bounds = array<i64: 1, 256>}, {pipeline_mode = #tpu.pipeline_mode<synchronous>, transform_indices = @transform_3, window_bounds = array<i64: 256, 128>}, {pipeline_mode = #tpu.pipeline_mode<synchronous>, transform_indices = @transform_4, window_bounds = array<i64: 1, 128>}, {pipeline_mode = #tpu.pipeline_mode<synchronous>, transform_indices = @transform_5, window_bounds = array<i64: 1, 128>}, {pipeline_mode = #tpu.pipeline_mode<synchronous>, transform_indices = @transform_6, window_bounds = array<i64: 1, 1>}, {transform_indices = @transform_7, window_bounds = array<i64: 8, 1>}]} {
    %c0 = arith.constant 0 : index
    %c0_0 = arith.constant 0 : index
    %0 = vector.load %arg1[%c0, %c0_0] : memref<8x32xbf16, #tpu.memory_space<vmem>>, vector<8x32xbf16>
    %c0_1 = arith.constant 0 : index
    %c0_2 = arith.constant 0 : index
    %1 = vector.load %arg2[%c0_1, %c0_2] : memref<32x256xbf16, #tpu.memory_space<vmem>>, vector<32x256xbf16>
    %cst = arith.constant dense<0.000000e+00> : vector<8x256xf32>
    %2 = tpu.matmul %0, %1, %cst {dimension_numbers = #tpu.dot_dimension_numbers<[1], [0], [0], [1], [0, 0, 1, 1], [], []>} : vector<8x32xbf16>, vector<32x256xbf16>, vector<8x256xf32> -> vector<8x256xf32>
    %c0_3 = arith.constant 0 : index
    %c0_4 = arith.constant 0 : index
    %3 = vector.load %arg3[%c0_3, %c0_4] : memref<1x256xf32, #tpu.memory_space<vmem>>, vector<1x256xf32>
    %4 = vector.broadcast %3 : vector<1x256xf32> to vector<8x256xf32>
    %5 = arith.addf %2, %4 : vector<8x256xf32>
    %cst_5 = arith.constant 0.000000e+00 : f32
    %6 = vector.broadcast %cst_5 : f32 to vector<8x256xf32>
    %7 = arith.maximumf %5, %6 : vector<8x256xf32>
    %8 = arith.truncf %7 : vector<8x256xf32> to vector<8x256xbf16>
    %c0_6 = arith.constant 0 : index
    %c0_7 = arith.constant 0 : index
    %9 = vector.load %arg4[%c0_6, %c0_7] : memref<256x128xbf16, #tpu.memory_space<vmem>>, vector<256x128xbf16>
    %cst_8 = arith.constant dense<0.000000e+00> : vector<8x128xf32>
    %10 = tpu.matmul %8, %9, %cst_8 {dimension_numbers = #tpu.dot_dimension_numbers<[1], [0], [0], [1], [0, 0, 1, 1], [], []>} : vector<8x256xbf16>, vector<256x128xbf16>, vector<8x128xf32> -> vector<8x128xf32>
    %c0_9 = arith.constant 0 : index
    %c0_10 = arith.constant 0 : index
    %11 = vector.load %arg5[%c0_9, %c0_10] : memref<1x128xf32, #tpu.memory_space<vmem>>, vector<1x128xf32>
    %12 = vector.broadcast %11 : vector<1x128xf32> to vector<8x128xf32>
    %13 = arith.addf %10, %12 : vector<8x128xf32>
    %cst_11 = arith.constant 0.000000e+00 : f32
    %14 = vector.broadcast %cst_11 : f32 to vector<8x128xf32>
    %15 = arith.maximumf %13, %14 : vector<8x128xf32>
    %c0_12 = arith.constant 0 : index
    %c0_13 = arith.constant 0 : index
    %16 = vector.load %arg6[%c0_12, %c0_13] : memref<1x128xf32, #tpu.memory_space<vmem>>, vector<1x128xf32>
    %17 = vector.broadcast %16 : vector<1x128xf32> to vector<8x128xf32>
    %18 = arith.mulf %15, %17 : vector<8x128xf32>
    %cst_14 = arith.constant dense<0.000000e+00> : vector<8xf32>
    %19 = vector.multi_reduction <add>, %18, %cst_14 [1] : vector<8x128xf32> to vector<8xf32>
    %20 = vector.shape_cast %19 : vector<8xf32> to vector<8x1xf32>
    %c0_15 = arith.constant 0 : index
    %c0_16 = arith.constant 0 : index
    %21 = vector.load %arg7[%c0_15, %c0_16] : memref<1x1xf32, #tpu.memory_space<vmem>>, vector<1x1xf32>
    %22 = vector.broadcast %21 : vector<1x1xf32> to vector<8x1xf32>
    %23 = arith.addf %20, %22 : vector<8x1xf32>
    %c0_17 = arith.constant 0 : index
    %c0_18 = arith.constant 0 : index
    %24 = vector.load %arg8[%c0_17, %c0_18] : memref<8x1xf32, #tpu.memory_space<vmem>>, vector<8x1xf32>
    tpu.vector_store %arg8[%c0_17, %c0_18], %23 {strides = array<i32>} : memref<8x1xf32, #tpu.memory_space<vmem>>, vector<8x1xf32>,
    return
  }
  func.func @transform_0(%arg0: i32) -> (i32, i32) {
    %c0_i32 = arith.constant 0 : i32
    %c0_i32_0 = arith.constant 0 : i32
    return %arg0, %c0_i32 : i32, i32
  }
  func.func @transform_1(%arg0: i32) -> (i32, i32) {
    %c0_i32 = arith.constant 0 : i32
    %c0_i32_0 = arith.constant 0 : i32
    %c0_i32_1 = arith.constant 0 : i32
    return %c0_i32, %c0_i32_0 : i32, i32
  }
  func.func @transform_2(%arg0: i32) -> (i32, i32) {
    %c0_i32 = arith.constant 0 : i32
    %c0_i32_0 = arith.constant 0 : i32
    %c0_i32_1 = arith.constant 0 : i32
    return %c0_i32, %c0_i32_0 : i32, i32
  }
  func.func @transform_3(%arg0: i32) -> (i32, i32) {
    %c0_i32 = arith.constant 0 : i32
    %c0_i32_0 = arith.constant 0 : i32
    %c0_i32_1 = arith.constant 0 : i32
    return %c0_i32, %c0_i32_0 : i32, i32
  }
  func.func @transform_4(%arg0: i32) -> (i32, i32) {
    %c0_i32 = arith.constant 0 : i32
    %c0_i32_0 = arith.constant 0 : i32
    %c0_i32_1 = arith.constant 0 : i32
    return %c0_i32, %c0_i32_0 : i32, i32
  }
  func.func @transform_5(%arg0: i32) -> (i32, i32) {
    %c0_i32 = arith.constant 0 : i32
    %c0_i32_0 = arith.constant 0 : i32
    %c0_i32_1 = arith.constant 0 : i32
    return %c0_i32, %c0_i32_0 : i32, i32
  }
  func.func @transform_6(%arg0: i32) -> (i32, i32) {
    %c0_i32 = arith.constant 0 : i32
    %c0_i32_0 = arith.constant 0 : i32
    %c0_i32_1 = arith.constant 0 : i32
    return %c0_i32, %c0_i32_0 : i32, i32
  }
  func.func @transform_7(%arg0: i32) -> (i32, i32) {
    %c0_i32 = arith.constant 0 : i32
    %c0_i32_0 = arith.constant 0 : i32
    return %arg0, %c0_i32 : i32, i32
  }
}

</mosaic_0001>

<llo_original>
// kernel: critic_forward.1
$region0: #{critic_forward.1}
  #allocation0 [shape = 'u32[]', space=smem, size = 0x4, offset = 0x4, fixed_abs, tag = 'smem constant byte address 0x4 - core index']
  #allocation1 [shape = 'u32[144,128]{1,0:T(1,128)}', space=vmem, size = 0x12000, scoped, tag = 'internal scratch']
  #allocation2 [shape = 'f32[1,1]{1,0:T(1,128)S(1)}', space=vmem, size = 0x200, scoped, tag = 'scoped memory for critic_forward.1']
  %s0 = inlined_call_operand.vmem [shape: bf16[8,32], index: 0, kind: input, shape index: {}]
  %s1 = inlined_call_operand.vmem [shape: bf16[32,256], index: 1, kind: input, shape index: {}]
  %s2 = inlined_call_operand.vmem [shape: f32[1,256], index: 2, kind: input, shape index: {}]
  %s3 = inlined_call_operand.vmem [shape: bf16[256,128], index: 3, kind: input, shape index: {}]
  %s4 = inlined_call_operand.vmem [shape: f32[1,128], index: 4, kind: input, shape index: {}]
  %s5 = inlined_call_operand.vmem [shape: f32[1,128], index: 5, kind: input, shape index: {}]
  %s6 = inlined_call_operand.<no memory space> [shape: f32[1,1], index: 6, kind: input, shape index: {}]
  %s7 = inlined_call_operand.vmem [shape: f32[8,1], index: 7, kind: output, shape index: {}]
  %s8 = sld [smem:[#allocation0]]
  $region38: #{critic_forward.1} parent=0
    _
  %s10 = ssub.s32 1, %s8
  %s11 = scalar_select 0, %s10, %s8
  %v12 = vstv %s6
  %13 = vst [vmem:[#allocation2] sm:$0x1] %v12
  // Predicated region
  $region2: #{critic_forward.1} parent=0 // pred_check
    _
  $region3: #{critic_forward.1} parent=0 // pred_check_branch
    %15 = sbr.rel (0) target = $region5
  $region4: #{critic_forward.1} parent=0 // pred_region
    _
  $region5: #{critic_forward.1} parent=0 // pred_fallthru
    _
  // Predicated region
  $region6: #{critic_forward.1} parent=0 // pred_check
    _
  $region7: #{critic_forward.1} parent=0 // pred_check_branch
    %17 = sbr.rel (0) target = $region9
  $region8: #{critic_forward.1} parent=0 // pred_region
    _
  $region9: #{critic_forward.1} parent=0 // pred_fallthru
    _
  // Predicated region
  $region10: #{critic_forward.1} parent=0 // pred_check
    _
  $region11: #{critic_forward.1} parent=0 // pred_check_branch
    %19 = sbr.rel (0) target = $region13
  $region12: #{critic_forward.1} parent=0 // pred_region
    _
  $region13: #{critic_forward.1} parent=0 // pred_fallthru
    _
  // Predicated region
  $region14: #{critic_forward.1} parent=0 // pred_check
    _
  $region15: #{critic_forward.1} parent=0 // pred_check_branch
    %21 = sbr.rel (0) target = $region17
  $region16: #{critic_forward.1} parent=0 // pred_region
    _
  $region17: #{critic_forward.1} parent=0 // pred_fallthru
    _
  // Predicated region
  $region18: #{critic_forward.1} parent=0 // pred_check
    _
  $region19: #{critic_forward.1} parent=0 // pred_check_branch
    %23 = sbr.rel (0) target = $region21
  $region20: #{critic_forward.1} parent=0 // pred_region
    _
  $region21: #{critic_forward.1} parent=0 // pred_fallthru
    _
  // Predicated region
  $region22: #{critic_forward.1} parent=0 // pred_check
    _
  $region23: #{critic_forward.1} parent=0 // pred_check_branch
    %25 = sbr.rel (0) target = $region25
  $region24: #{critic_forward.1} parent=0 // pred_region
    _
  $region25: #{critic_forward.1} parent=0 // pred_fallthru
    _
  // Predicated region
  $region26: #{critic_forward.1} parent=0 // pred_check
    _
  $region27: #{critic_forward.1} parent=0 // pred_check_branch
    %27 = sbr.rel (0) target = $region29
  $region28: #{critic_forward.1} parent=0 // pred_region
    _
  $region29: #{critic_forward.1} parent=0 // pred_fallthru
    _
  %v29 = vld [vmem:[%s0] sm:$0xf]
  %v30 = vld [vmem:[%s1] sm:$0xff]
  %v31 = vld [vmem:[%s1 + $0x8] sm:$0xff]
  %v32 = vld [vmem:[%s1 + $0x10] sm:$0xff]
  %v33 = vld [vmem:[%s1 + $0x18] sm:$0xff]
  %v34 = vld [vmem:[%s2] sm:$0x3]
  %v36 = vlaneseq
  %v37 = vshrl.u32 %v36, 7
  %v38 = vsub.s32 0, %v37
  %v39 = vrot.slane %v34, %v38
  %v40 = vlaneseq
  %v41 = vshrl.u32 %v40, 7
  %v42 = vsub.s32 1, %v41
  %v43 = vrot.slane %v34, %v42
  %v50 = vunpack.c.l.b16 %v30
  %v51 = vunpack.c.h.b16 %v30
  %v52 = vunpack.c.l.b16 %v31
  %v53 = vunpack.c.h.b16 %v31
  %v54 = vunpack.c.l.b16 %v32
  %v55 = vunpack.c.h.b16 %v32
  %v56 = vunpack.c.l.b16 %v33
  %v57 = vunpack.c.h.b16 %v33
  %v58 = vpack.c.b16 %v52, %v50
  %v59 = vpack.c.b16 %v53, %v51
  %v60 = vpack.c.b16 %v56, %v54
  %v61 = vpack.c.b16 %v57, %v55
  %vm66 = vcmask 261120
  %v68 = vsel %vm66, %v29, 0
  %70 = vmatprep.subr.bf16.mxu0 %v59
  %71 = vmatpush1.bf16.msra.mxu0 %v58
  %72 = vmatprep.subr.bf16.mxu0 %v61
  %73 = vmatpush1.bf16.msra.mxu0 %v60
  %74 = vmatprep.subr.bf16.mxu0 0
  %75 = vmatpush1.bf16.msra.mxu0 0
  %76 = vmatprep.subr.bf16.mxu0 0
  %77 = vmatpush1.bf16.msra.mxu0 0
  %78 = vmatprep.subr.bf16.mxu0 0
  %79 = vmatpush1.bf16.msra.mxu0 0
  %80 = vmatprep.subr.bf16.mxu0 0
  %81 = vmatpush1.bf16.msra.mxu0 0
  %82 = vmatprep.subr.bf16.mxu0 0
  %83 = vmatpush1.bf16.msra.mxu0 0
  %84 = vmatprep.subr.bf16.mxu0 0
  %85 = vmatpush1.bf16.msra.mxu0 0
  %86 = vmatprep.subr.bf16.mxu0 0
  %87 = vmatpush1.bf16.msra.mxu0 0
  %88 = vmatprep.subr.bf16.mxu0 0
  %89 = vmatpush1.bf16.msra.mxu0 0
  %90 = vmatprep.subr.bf16.mxu0 0
  %91 = vmatpush1.bf16.msra.mxu0 0
  %92 = vmatprep.subr.bf16.mxu0 0
  %93 = vmatpush1.bf16.msra.mxu0 0
  %94 = vmatprep.subr.bf16.mxu0 0
  %95 = vmatpush1.bf16.msra.mxu0 0
  %96 = vmatprep.subr.bf16.mxu0 0
  %97 = vmatpush1.bf16.msra.mxu0 0
  %98 = vmatprep.subr.bf16.mxu0 0
  %99 = vmatpush1.bf16.msra.mxu0 0
  %100 = vmatprep.subr.bf16.mxu0 0
  %101 = vmatpush1.bf16.msra.mxu0 0
  %102 = vmatprep.mubr.bf16.mxu0 0
  %103 = vmatmul.mubr.bf16.gmra.mrb[0].mxu0 %v68
  %v104 = vpop.f32.mrb[0].mxu0
  %v105 = vadd.f32 %v39, %v104
  %v106 = vpop.f32.mrb[0].mxu0
  %v107 = vadd.f32 %v43, %v106
  %v108 = vpop.f32.mrb[0].mxu0
  %v109 = vpop.f32.mrb[0].mxu0
  %110 = vdwg.mxu0
  %v111 = vmax.f32 %v105, 0.0
  %v112 = vmax.f32 %v107, 0.0
  %v113 = vpack.c.bf16 %v111, %v111
  %v114 = vpack.c.bf16 %v112, %v112
  %v115 = vld [vmem:[%s3] sm:$0xf]
  %v116 = vld [vmem:[%s3 + $0x4] sm:$0xf]
  %v117 = vld [vmem:[%s3 + $0x8] sm:$0xf]
  %v118 = vld [vmem:[%s3 + $0xc] sm:$0xf]
  %v119 = vld [vmem:[%s3 + $0x10] sm:$0xf]
  %v120 = vld [vmem:[%s3 + $0x14] sm:$0xf]
  %v121 = vld [vmem:[%s3 + $0x18] sm:$0xf]
  %v122 = vld [vmem:[%s3 + $0x1c] sm:$0xf]
  %v123 = vld [vmem:[%s3 + $0x20] sm:$0xf]
  %v124 = vld [vmem:[%s3 + $0x24] sm:$0xf]
  %v125 = vld [vmem:[%s3 + $0x28] sm:$0xf]
  %v126 = vld [vmem:[%s3 + $0x2c] sm:$0xf]
  %v127 = vld [vmem:[%s3 + $0x30] sm:$0xf]
  %v128 = vld [vmem:[%s3 + $0x34] sm:$0xf]
  %v129 = vld [vmem:[%s3 + $0x38] sm:$0xf]
  %v130 = vld [vmem:[%s3 + $0x3c] sm:$0xf]
  %v131 = vld [vmem:[%s3 + $0x40] sm:$0xf]
  %v132 = vld [vmem:[%s3 + $0x44] sm:$0xf]
  %v133 = vld [vmem:[%s3 + $0x48] sm:$0xf]
  %v134 = vld [vmem:[%s3 + $0x4c] sm:$0xf]
  %v135 = vld [vmem:[%s3 + $0x50] sm:$0xf]
  %v136 = vld [vmem:[%s3 + $0x54] sm:$0xf]
  %v137 = vld [vmem:[%s3 + $0x58] sm:$0xf]
  %v138 = vld [vmem:[%s3 + $0x5c] sm:$0xf]
  %v139 = vld [vmem:[%s3 + $0x60] sm:$0xf]
  %v140 = vld [vmem:[%s3 + $0x64] sm:$0xf]
  %v141 = vld [vmem:[%s3 + $0x68] sm:$0xf]
  %v142 = vld [vmem:[%s3 + $0x6c] sm:$0xf]
  %v143 = vld [vmem:[%s3 + $0x70] sm:$0xf]
  %v144 = vld [vmem:[%s3 + $0x74] sm:$0xf]
  %v145 = vld [vmem:[%s3 + $0x78] sm:$0xf]
  %v146 = vld [vmem:[%s3 + $0x7c] sm:$0xf]
  %v147 = vld [vmem:[%s4] sm:$0x1]
  %v149 = vlaneseq
  %v150 = vshrl.u32 %v149, 7
  %v151 = vsub.s32 0, %v150
  %v152 = vrot.slane %v147, %v151
  %v186 = vunpack.c.l.b16 %v115
  %v187 = vunpack.c.l.b16 %v116
  %v188 = vunpack.c.l.b16 %v117
  %v189 = vunpack.c.l.b16 %v118
  %v190 = vunpack.c.l.b16 %v119
  %v191 = vunpack.c.l.b16 %v120
  %v192 = vunpack.c.l.b16 %v121
  %v193 = vunpack.c.l.b16 %v122
  %v194 = vunpack.c.l.b16 %v123
  %v195 = vunpack.c.l.b16 %v124
  %v196 = vunpack.c.l.b16 %v125
  %v197 = vunpack.c.l.b16 %v126
  %v198 = vunpack.c.l.b16 %v127
  %v199 = vunpack.c.l.b16 %v128
  %v200 = vunpack.c.l.b16 %v129
  %v201 = vunpack.c.l.b16 %v130
  %v202 = vunpack.c.l.b16 %v131
  %v203 = vunpack.c.l.b16 %v132
  %v204 = vunpack.c.l.b16 %v133
  %v205 = vunpack.c.l.b16 %v134
  %v206 = vunpack.c.l.b16 %v135
  %v207 = vunpack.c.l.b16 %v136
  %v208 = vunpack.c.l.b16 %v137
  %v209 = vunpack.c.l.b16 %v138
  %v210 = vunpack.c.l.b16 %v139
  %v211 = vunpack.c.l.b16 %v140
  %v212 = vunpack.c.l.b16 %v141
  %v213 = vunpack.c.l.b16 %v142
  %v214 = vunpack.c.l.b16 %v143
  %v215 = vunpack.c.l.b16 %v144
  %v216 = vunpack.c.l.b16 %v145
  %v217 = vunpack.c.l.b16 %v146
  %v218 = vpack.c.b16 %v187, %v186
  %v219 = vpack.c.b16 %v189, %v188
  %v220 = vpack.c.b16 %v191, %v190
  %v221 = vpack.c.b16 %v193, %v192
  %v222 = vpack.c.b16 %v195, %v194
  %v223 = vpack.c.b16 %v197, %v196
  %v224 = vpack.c.b16 %v199, %v198
  %v225 = vpack.c.b16 %v201, %v200
  %v226 = vpack.c.b16 %v203, %v202
  %v227 = vpack.c.b16 %v205, %v204
  %v228 = vpack.c.b16 %v207, %v206
  %v229 = vpack.c.b16 %v209, %v208
  %v230 = vpack.c.b16 %v211, %v210
  %v231 = vpack.c.b16 %v213, %v212
  %v232 = vpack.c.b16 %v215, %v214
  %v233 = vpack.c.b16 %v217, %v216
  %250 = vmatprep.subr.bf16.mxu0 0
  %251 = vmatpush1.bf16.msra.mxu0 %v218
  %252 = vmatprep.subr.bf16.mxu0 0
  %253 = vmatpush1.bf16.msra.mxu0 %v219
  %254 = vmatprep.subr.bf16.mxu0 0
  %255 = vmatpush1.bf16.msra.mxu0 %v220
  %256 = vmatprep.subr.bf16.mxu0 0
  %257 = vmatpush1.bf16.msra.mxu0 %v221
  %258 = vmatprep.subr.bf16.mxu0 0
  %259 = vmatpush1.bf16.msra.mxu0 %v222
  %260 = vmatprep.subr.bf16.mxu0 0
  %261 = vmatpush1.bf16.msra.mxu0 %v223
  %262 = vmatprep.subr.bf16.mxu0 0
  %263 = vmatpush1.bf16.msra.mxu0 %v224
  %264 = vmatprep.subr.bf16.mxu0 0
  %265 = vmatpush1.bf16.msra.mxu0 %v225
  %266 = vmatprep.subr.bf16.mxu0 0
  %267 = vmatpush1.bf16.msra.mxu0 %v226
  %268 = vmatprep.subr.bf16.mxu0 0
  %269 = vmatpush1.bf16.msra.mxu0 %v227
  %270 = vmatprep.subr.bf16.mxu0 0
  %271 = vmatpush1.bf16.msra.mxu0 %v228
  %272 = vmatprep.subr.bf16.mxu0 0
  %273 = vmatpush1.bf16.msra.mxu0 %v229
  %274 = vmatprep.subr.bf16.mxu0 0
  %275 = vmatpush1.bf16.msra.mxu0 %v230
  %276 = vmatprep.subr.bf16.mxu0 0
  %277 = vmatpush1.bf16.msra.mxu0 %v231
  %278 = vmatprep.subr.bf16.mxu0 0
  %279 = vmatpush1.bf16.msra.mxu0 %v232
  %280 = vmatprep.subr.bf16.mxu0 0
  %281 = vmatpush1.bf16.msra.mxu0 %v233
  %282 = vmatprep.mubr.bf16.mxu0 %v114
  %283 = vmatmul.mubr.bf16.gmra.mrb[0].mxu0 %v113
  %v284 = vpop.f32.mrb[0].mxu0
  %v285 = vadd.f32 %v152, %v284
  %v286 = vpop.f32.mrb[0].mxu0
  %v287 = vpop.f32.mrb[0].mxu0
  %v288 = vpop.f32.mrb[0].mxu0
  %289 = vdwg.mxu0
  %v290 = vmax.f32 %v285, 0.0
  %v291 = vld [vmem:[%s5] sm:$0x1]
  %v293 = vlaneseq
  %v294 = vshrl.u32 %v293, 7
  %v295 = vsub.s32 0, %v294
  %v296 = vrot.slane %v291, %v295
  %v298 = vmul.f32 %v290, %v296
  %299 = vadd.xlane.f32.xlu0 %v298
  %v300 = vpop.xlane.xlu0 %299
  %v301 = vld [vmem:[#allocation2] sm:$0x1]
  %v303 = vlaneseq
  %v304 = vshrl.u32 %v303, 7
  %v305 = vsub.s32 0, %v304
  %v306 = vrot.slane %v301, %v305
  %v308 = vadd.f32 %v300, %v306
  %vm309 = vcmask 7168
  %310 = vst.msk [vmem:[%s7] sm:$0xff] %vm309, %v308
  // Predicated region
  $region30: #{critic_forward.1} parent=0 // pred_check
    _
  $region31: #{critic_forward.1} parent=0 // pred_check_branch
    %312 = sbr.rel (0) target = $region33
  $region32: #{critic_forward.1} parent=0 // pred_region
    _
  $region33: #{critic_forward.1} parent=0 // pred_fallthru
    _
  // Predicated region
  $region34: #{critic_forward.1} parent=0 // pred_check
    _
  $region35: #{critic_forward.1} parent=0 // pred_check_branch
    %314 = sbr.rel (0) target = $region37
  $region36: #{critic_forward.1} parent=0 // pred_region
    _
  $region37: #{critic_forward.1} parent=0 // pred_fallthru
    _

</llo_original>
